<compile_context>
chip_gen: v7x
topology: tpu7x:2x2x1
jax: 0.10.0
libtpu: 0.0.40
codegen_flags: <defaults>
</compile_context>

<pallas_src>
import math
import functools

import jax
import jax.numpy as jnp
from jax import lax
from jax.experimental import pallas as pl
from jax.experimental.pallas import tpu as pltpu


# --------------------------------------------------------------------------
# Kernel 1: batch-invariant bias table  bias[h, p] = scale * emb[bucket(p), h]
# --------------------------------------------------------------------------
def _t5_bias_table_kernel(qpos_ref, kpos_ref, emb_ref, bias_ref, *,
                          num_buckets, max_distance):
    # qpos_ref / kpos_ref : (1, TPB) int32   flattened q / k position per lane
    # emb_ref             : (H, NB)  f32     scale-folded, pre-transposed table
    # bias_ref            : (H, TPB) f32     output tile
    q_pos = qpos_ref[...]
    k_pos = kpos_ref[...]

    # _relative_position_bucket (unidirectional): n = max(q - k, 0)
    n = jnp.maximum(q_pos - k_pos, 0)                       # (1, TPB)
    max_exact = num_buckets // 2
    is_small = n < max_exact
    # Clamp before the log so "small" lanes never feed log(<=0) into the EUP
    # (they are masked out by the where anyway).  Operation ordering matches
    # the PyTorch reference (divide, then divide by log, then multiply).
    nf = jnp.maximum(n.astype(jnp.float32), jnp.float32(max_exact))
    val_if_large = max_exact + (
        jnp.log(nf / max_exact)
        / math.log(max_distance / max_exact)
        * (num_buckets - max_exact)
    ).astype(jnp.int32)                  # trunc toward zero == torch .long()
    val_if_large = jnp.minimum(val_if_large, num_buckets - 1)
    bucket = jnp.where(is_small, n, val_if_large)           # (1, TPB)

    # Transposed one-hot gather: only this cheap compare runs at (NB, TPB),
    # and it is bounded by the bias-kernel tile (TPB), not the hot-path tile.
    nb_iota = lax.broadcasted_iota(jnp.int32, (num_buckets, bucket.shape[-1]), 0)
    onehot_t = (bucket == nb_iota).astype(jnp.float32)      # (NB, TPB)

    # bias[h, p] = sum_nb emb_scaled_T[h, nb] * onehot_T[nb, p]   (MXU)
    bias_ref[...] = jnp.dot(emb_ref[...], onehot_t,
                            preferred_element_type=jnp.float32)


# --------------------------------------------------------------------------
# Kernel 2: hot path — pure lane-dense streaming add (HBM roofline)
# --------------------------------------------------------------------------
def _t5_add_kernel(bias_ref, qk_ref, out_ref):
    # bias_ref : (H, TP) f32   (batch-invariant, fetched once per p-tile)
    # qk_ref   : (H, TP) qk dtype
    # out_ref  : (H, TP) qk dtype
    out_ref[...] = (qk_ref[...] + bias_ref[...]).astype(out_ref.dtype)


# --------------------------------------------------------------------------
# Tile pickers (VMEM aware, harden against P not divisible by 128)
# --------------------------------------------------------------------------
def _pick_qk_tile(p_pad, heads, elem_bytes, max_tile_bytes=2 << 20):
    """Largest 128-multiple divisor of p_pad with an (H, TP) buffer under
    max_tile_bytes (2 MiB default: comfortably inside scoped VMEM on
    v5e/v6e/v7x once double-buffered in + out + bias are accounted for)."""
    assert p_pad % 128 == 0
    tp = p_pad
    while tp % 256 == 0 and heads * tp * elem_bytes > max_tile_bytes:
        tp //= 2
    # v7x megacore: prefer >= 2 p-tiles when P is large enough to split
    # (for small P the batch axis, also "parallel", feeds the second core).
    if tp == p_pad and p_pad >= 256 * 128 and p_pad % 256 == 0:
        tp //= 2
    return tp


def _pick_bias_tile(p_pad, heads, num_buckets, max_bytes=1 << 20):
    """Tile for the bias-table kernel; budget includes the (NB, TPB) iota and
    one-hot temporaries plus the (H, TPB) output and position rows."""
    assert p_pad % 128 == 0
    tp = p_pad
    per_lane_bytes = (2 * num_buckets + heads + 4) * 4
    while tp % 256 == 0 and per_lane_bytes * tp > max_bytes:
        tp //= 2
    return tp


# --------------------------------------------------------------------------
# Wrapper
# --------------------------------------------------------------------------
def t5_relative_position_bias(qk_dots, emb_table, *, scale, num_buckets,
                              max_distance, donate_qk=False):
    """qk_dots: (B, H, I, J); emb_table: (num_buckets, H).
    Returns qk_dots + scale * bias, same shape/dtype as qk_dots.

    donate_qk=True adds input_output_aliases so a caller that donates qk_dots
    avoids the extra HBM output allocation (leave False if qk_dots is reused
    afterwards, as in the self-test below)."""
    B, H, I, J = qk_dots.shape
    NB, H_e = emb_table.shape
    assert H_e == H and NB == num_buckets

    P = I * J
    P_pad = ((P + 127) // 128) * 128          # lane-dense last dim
    pad = P_pad - P

    # Lane-dense layout: (I, J) -> P so the last dim is a multiple of 128.
    qk_flat = qk_dots.reshape(B, H, P)
    if pad:
        qk_flat = jnp.pad(qk_flat, ((0, 0), (0, 0), (0, pad)))

    # Tiny index rows (no in-kernel integer divide/modulo): q_pos, k_pos per
    # flattened position, padded tail clamped to 0 (bucket 0, finite values).
    q_ids = jnp.broadcast_to(
        jnp.arange(I, dtype=jnp.int32)[:, None], (I, J)).reshape(1, P)
    k_ids = jnp.broadcast_to(
        jnp.arange(J, dtype=jnp.int32)[None, :], (I, J)).reshape(1, P)
    if pad:
        q_ids = jnp.pad(q_ids, ((0, 0), (0, pad)))
        k_ids = jnp.pad(k_ids, ((0, 0), (0, pad)))

    # Fold scale into the tiny table and pre-transpose to (H, NB): removes a
    # per-element multiply over B*H*I*J and any in-kernel transpose.
    emb_t_scaled = (emb_table.astype(jnp.float32) * jnp.float32(scale)).T

    # ---- Pallas call 1: bias table (H, P_pad), built once, batch-invariant
    TPB = _pick_bias_tile(P_pad, H, NB)
    bias_hp = pl.pallas_call(
        functools.partial(_t5_bias_table_kernel,
                          num_buckets=num_buckets, max_distance=max_distance),
        out_shape=jax.ShapeDtypeStruct((H, P_pad), jnp.float32),
        grid=(P_pad // TPB,),
        in_specs=[
            pl.BlockSpec((1, TPB), lambda p: (0, p)),
            pl.BlockSpec((1, TPB), lambda p: (0, p)),
            pl.BlockSpec((H, NB), lambda p: (0, 0)),
        ],
        out_specs=pl.BlockSpec((H, TPB), lambda p: (0, p)),
        compiler_params=pltpu.CompilerParams(
            dimension_semantics=("parallel",),
        ),
    )(q_ids, k_ids, emb_t_scaled)

    # ---- Pallas call 2: streaming add over (B, H, P_pad)
    TP = _pick_qk_tile(P_pad, H, qk_flat.dtype.itemsize)
    num_p = P_pad // TP

    out_flat = pl.pallas_call(
        _t5_add_kernel,
        out_shape=jax.ShapeDtypeStruct((B, H, P_pad), qk_dots.dtype),
        # p outer / b inner: the bias block index (0, p) is constant along the
        # inner batch axis, so Pallas fetches each bias tile only once.
        grid=(num_p, B),
        in_specs=[
            pl.BlockSpec((H, TP), lambda p, b: (0, p)),
            pl.BlockSpec((None, H, TP), lambda p, b: (b, 0, p)),
        ],
        out_specs=pl.BlockSpec((None, H, TP), lambda p, b: (b, 0, p)),
        input_output_aliases=({1: 0} if donate_qk else {}),
        compiler_params=pltpu.CompilerParams(
            # No cross-step state: both axes parallel (v7x megacore can shard
            # either the p or the b axis).
            dimension_semantics=("parallel", "parallel"),
            # Covers 2x(in) + 2x(out) + 2x(bias) tiles with headroom on all
            # of v5e / v6e / v7x.
            vmem_limit_bytes=32 * 1024 * 1024,
        ),
    )(bias_hp, qk_flat)

    if pad:
        out_flat = out_flat[..., :P]
    return out_flat.reshape(B, H, I, J)


# --------------------------------------------------------------------------
# Pure-JAX mirror of the PyTorch forward, for verification.
# --------------------------------------------------------------------------
def _reference(qk_dots, emb_table, *, scale, num_buckets, max_distance):
    i, j = qk_dots.shape[-2:]
    q_pos = jnp.arange(i, dtype=jnp.int32)
    k_pos = jnp.arange(j, dtype=jnp.int32)
    rel_pos = k_pos[None, :] - q_pos[:, None]
    n = jnp.maximum(-rel_pos, 0)
    max_exact = num_buckets // 2
    is_small = n < max_exact
    val_if_large = max_exact + (
        jnp.log(jnp.maximum(n.astype(jnp.float32), 1.0) / max_exact)
        / math.log(max_distance / max_exact)
        * (num_buckets - max_exact)
    ).astype(jnp.int32)
    val_if_large = jnp.minimum(val_if_large, num_buckets - 1)
    bucket = jnp.where(is_small, n, val_if_large)
    values = emb_table[bucket]                       # (i, j, h)
    bias = jnp.transpose(values, (2, 0, 1))[None]    # (1, h, i, j)
    return qk_dots + bias * scale


if __name__ == "__main__":
    # Module hyper-parameters (from __init__ defaults).
    num_buckets = 32
    max_distance = 128
    heads = 8
    scale = 0.125

    batch, seq_i, seq_j = 2, 16, 16

    key = jax.random.PRNGKey(0)
    k_qk, k_emb = jax.random.split(key)
    qk_dots = jax.random.normal(k_qk, (batch, heads, seq_i, seq_j),
                                dtype=jnp.float32)
    # nn.Embedding(num_buckets, heads) weight ~ N(0, 1), deterministic here.
    emb_table = jax.random.normal(k_emb, (num_buckets, heads),
                                  dtype=jnp.float32)

    out = t5_relative_position_bias(
        qk_dots, emb_table,
        scale=scale, num_buckets=num_buckets, max_distance=max_distance,
    )
    out = jax.block_until_ready(out)

    ref = _reference(
        qk_dots, emb_table,
        scale=scale, num_buckets=num_buckets, max_distance=max_distance,
    )
    assert out.shape == qk_dots.shape and out.dtype == qk_dots.dtype
    assert jnp.allclose(out, ref, atol=1e-5, rtol=1e-5), "kernel/reference mismatch"
    print("KERNEL_OK")
</pallas_src>

<mosaic_0001>
module attributes {stable_mosaic.version = 11 : i64} {
  func.func @_t5_bias_table_kernel(%arg0: i32, %arg1: memref<1x256xi32, #tpu.memory_space<vmem>>, %arg2: memref<1x256xi32, #tpu.memory_space<vmem>>, %arg3: memref<8x32xf32, #tpu.memory_space<vmem>>, %arg4: memref<8x256xf32, #tpu.memory_space<vmem>>) attributes {dimension_semantics = [#tpu.dimension_semantics<parallel>], iteration_bounds = array<i64: 1>, scalar_prefetch = 0 : i64, scratch_operands = 0 : i64, tpu.core_type = #tpu.core_type<tc>, window_params = [{transform_indices = @transform_0, window_bounds = array<i64: 1, 256>}, {transform_indices = @transform_1, window_bounds = array<i64: 1, 256>}, {pipeline_mode = #tpu.pipeline_mode<synchronous>, transform_indices = @transform_2, window_bounds = array<i64: 8, 32>}, {transform_indices = @transform_3, window_bounds = array<i64: 8, 256>}]} {
    %c0 = arith.constant 0 : index
    %c0_0 = arith.constant 0 : index
    %0 = vector.load %arg1[%c0, %c0_0] : memref<1x256xi32, #tpu.memory_space<vmem>>, vector<1x256xi32>
    %c0_1 = arith.constant 0 : index
    %c0_2 = arith.constant 0 : index
    %1 = vector.load %arg2[%c0_1, %c0_2] : memref<1x256xi32, #tpu.memory_space<vmem>>, vector<1x256xi32>
    %2 = arith.subi %0, %1 : vector<1x256xi32>
    %c0_i32 = arith.constant 0 : i32
    %3 = vector.broadcast %c0_i32 : i32 to vector<1x256xi32>
    %4 = arith.maxsi %2, %3 : vector<1x256xi32>
    %c16_i32 = arith.constant 16 : i32
    %5 = vector.broadcast %c16_i32 : i32 to vector<1x256xi32>
    %6 = arith.cmpi slt, %4, %5 : vector<1x256xi32>
    %7 = arith.sitofp %4 : vector<1x256xi32> to vector<1x256xf32>
    %cst = arith.constant 1.600000e+01 : f32
    %8 = vector.broadcast %cst : f32 to vector<1x256xf32>
    %9 = arith.maximumf %7, %8 : vector<1x256xf32>
    %cst_3 = arith.constant 1.600000e+01 : f32
    %10 = vector.broadcast %cst_3 : f32 to vector<1x256xf32>
    %11 = arith.divf %9, %10 : vector<1x256xf32>
    %12 = math.log %11 : vector<1x256xf32>
    %cst_4 = arith.constant 2.07944155 : f32
    %13 = vector.broadcast %cst_4 : f32 to vector<1x256xf32>
    %14 = arith.divf %12, %13 : vector<1x256xf32>
    %cst_5 = arith.constant 1.600000e+01 : f32
    %15 = vector.broadcast %cst_5 : f32 to vector<1x256xf32>
    %16 = arith.mulf %14, %15 : vector<1x256xf32>
    %17 = arith.fptosi %16 : vector<1x256xf32> to vector<1x256xi32>
    %c16_i32_6 = arith.constant 16 : i32
    %18 = vector.broadcast %c16_i32_6 : i32 to vector<1x256xi32>
    %19 = arith.addi %18, %17 : vector<1x256xi32>
    %c31_i32 = arith.constant 31 : i32
    %20 = vector.broadcast %c31_i32 : i32 to vector<1x256xi32>
    %21 = arith.minsi %19, %20 : vector<1x256xi32>
    %22 = arith.select %6, %4, %21 : vector<1x256xi1>, vector<1x256xi32>
    %23 = tpu.iota {dimensions = array<i32: 0>} : vector<32x256xi32>
    %24 = vector.broadcast %22 : vector<1x256xi32> to vector<32x256xi32>
    %25 = arith.cmpi eq, %24, %23 : vector<32x256xi32>
    %26 = arith.extui %25 : vector<32x256xi1> to vector<32x256xi32>
    %27 = arith.sitofp %26 : vector<32x256xi32> to vector<32x256xf32>
    %c0_7 = arith.constant 0 : index
    %c0_8 = arith.constant 0 : index
    %28 = vector.load %arg3[%c0_7, %c0_8] : memref<8x32xf32, #tpu.memory_space<vmem>>, vector<8x32xf32>
    %cst_9 = arith.constant dense<0.000000e+00> : vector<8x256xf32>
    %29 = tpu.matmul %28, %27, %cst_9 {dimension_numbers = #tpu.dot_dimension_numbers<[1], [0], [0], [1], [0, 0, 1, 1], [], []>} : vector<8x32xf32>, vector<32x256xf32>, vector<8x256xf32> -> vector<8x256xf32>
    %c0_10 = arith.constant 0 : index
    %c0_11 = arith.constant 0 : index
    %30 = vector.load %arg4[%c0_10, %c0_11] : memref<8x256xf32, #tpu.memory_space<vmem>>, vector<8x256xf32>
    tpu.vector_store %arg4[%c0_10, %c0_11], %29 {strides = array<i32>} : memref<8x256xf32, #tpu.memory_space<vmem>>, vector<8x256xf32>,
    return
  }
  func.func @transform_0(%arg0: i32) -> (i32, i32) {
    %c0_i32 = arith.constant 0 : i32
    %c0_i32_0 = arith.constant 0 : i32
    return %c0_i32, %arg0 : i32, i32
  }
  func.func @transform_1(%arg0: i32) -> (i32, i32) {
    %c0_i32 = arith.constant 0 : i32
    %c0_i32_0 = arith.constant 0 : i32
    return %c0_i32, %arg0 : i32, i32
  }
  func.func @transform_2(%arg0: i32) -> (i32, i32) {
    %c0_i32 = arith.constant 0 : i32
    %c0_i32_0 = arith.constant 0 : i32
    %c0_i32_1 = arith.constant 0 : i32
    return %c0_i32, %c0_i32_0 : i32, i32
  }
  func.func @transform_3(%arg0: i32) -> (i32, i32) {
    %c0_i32 = arith.constant 0 : i32
    %c0_i32_0 = arith.constant 0 : i32
    return %c0_i32, %arg0 : i32, i32
  }
}

</mosaic_0001>

<llo_original>
// kernel: tpu_custom_call.1
$region0: #{tpu_custom_call.1}
  #allocation0 [shape = 'u32[]', space=smem, size = 0x4, offset = 0x4, fixed_abs, tag = 'smem constant byte address 0x4 - core index']
  #allocation1 [shape = 'u32[144,128]{1,0:T(1,128)}', space=vmem, size = 0x12000, scoped, tag = 'internal scratch']
  %s0 = inlined_call_operand.hbm [shape: s32[1,256], index: 0, kind: input, shape index: {}]
  %s1 = inlined_call_operand.vmem [shape: s32[1,256], index: 1, kind: input, shape index: {}]
  %s2 = inlined_call_operand.hbm [shape: f32[8,32], index: 2, kind: input, shape index: {}]
  %s3 = inlined_call_operand.hbm [shape: f32[8,256], index: 3, kind: output, shape index: {}]
  %s4 = sld [smem:[#allocation0]]
  $region30: #{tpu_custom_call.1} parent=0
    _
  %s6 = ssub.s32 1, %s4
  %s7 = scalar_select 0, %s6, %s4
  $region1: #{tpu_custom_call.1} parent=0
    #allocation2 [shape = 'u8[1024]{0}', space=vmem, size = 0x400, scoped, tag = 'input window, operand 0, single buffered']
    #allocation3 [shape = 's32[1]{0}', space=sflag, size = 0x4, scoped, tag = 'scoped memory for tpu_custom_call.1']
    #allocation4 [shape = 's32[1]{0}', space=sflag, size = 0x4, scoped, tag = 'scoped memory for tpu_custom_call.1']
    #allocation5 [shape = 'u8[4096]{0}', space=vmem, size = 0x1000, scoped, tag = 'input window, operand 2, single buffered']
    #allocation6 [shape = 's32[1]{0}', space=sflag, size = 0x4, scoped, tag = 'scoped memory for tpu_custom_call.1']
    #allocation7 [shape = 'u8[8192]{0}', space=vmem, size = 0x2000, scoped, tag = 'output window, operand 0, single buffered']
    %8 = vsyncpa [#allocation3], 0
    %9 = vsyncpa [#allocation6], 0
    %10 = vsyncpa [#allocation4], 0
    // Predicated region
    $region2: #{tpu_custom_call.1} parent=1 // pred_check
      _
    $region3: #{tpu_custom_call.1} parent=1 // pred_check_branch
      %12 = sbr.rel (0) target = $region5
    $region4: #{tpu_custom_call.1} parent=1 // pred_region
      %s14 = ssub.s32 32, 32
      %15 = vsyncadd [#allocation3], %s14
      %s17 = sshll.u32 [#allocation2], 4
      %s18 = int_to_ptr.vmem [resolvable:$true] %s17
      %20 = dma.hbm_to_vmem [thread:$0]  %s0, 32, %s18, [#allocation3]
    $region5: #{tpu_custom_call.1} parent=1 // pred_fallthru
      _
    // Predicated region
    $region6: #{tpu_custom_call.1} parent=1 // pred_check
      _
    $region7: #{tpu_custom_call.1} parent=1 // pred_check_branch
      %22 = sbr.rel (0) target = $region9
    $region8: #{tpu_custom_call.1} parent=1 // pred_region
      _
    $region9: #{tpu_custom_call.1} parent=1 // pred_fallthru
      _
    // Predicated region
    $region10: #{tpu_custom_call.1} parent=1 // pred_check
      _
    $region11: #{tpu_custom_call.1} parent=1 // pred_check_branch
      %24 = sbr.rel (0) target = $region13
    $region12: #{tpu_custom_call.1} parent=1 // pred_region
      %s26 = ssub.s32 128, 128
      %27 = vsyncadd [#allocation6], %s26
      %s29 = sshll.u32 [#allocation5], 4
      %s30 = int_to_ptr.vmem [resolvable:$true] %s29
      %32 = dma.hbm_to_vmem [thread:$0]  %s2, 128, %s30, [#allocation6]
    $region13: #{tpu_custom_call.1} parent=1 // pred_fallthru
      _
    // Predicated region
    $region14: #{tpu_custom_call.1} parent=1 // pred_check
      _
    $region15: #{tpu_custom_call.1} parent=1 // pred_check_branch
      %34 = sbr.rel (0) target = $region17
    $region16: #{tpu_custom_call.1} parent=1 // pred_region
      %35 = dma.done [#allocation3], 32
    $region17: #{tpu_custom_call.1} parent=1 // pred_fallthru
      _
    // Predicated region
    $region18: #{tpu_custom_call.1} parent=1 // pred_check
      _
    $region19: #{tpu_custom_call.1} parent=1 // pred_check_branch
      %37 = sbr.rel (0) target = $region21
    $region20: #{tpu_custom_call.1} parent=1 // pred_region
      %38 = dma.done [#allocation6], 128
    $region21: #{tpu_custom_call.1} parent=1 // pred_fallthru
      _
    %v39 = vld [vmem:[#allocation2] sm:$0x3]
    %v40 = vld [vmem:[%s1] sm:$0x3]
    %v41 = vsub.s32 %v39, %v40
    %vm42 = vcmp.gt.s32.totalorder %v41, 0
    %v43 = vsel %vm42, %v41, 0
    %vm44 = vcmp.lt.s32.totalorder %v43, 16
    %v45 = vcvt.s32.f32 %v43
    %v46 = vmax.f32 %v45, 16.0
    %v47 = vrcp.pop 16.0
    %v48 = vmul.f32 %v46, %v47
    %v49 = vlog2.pop %v48
    %v50 = vmul.f32 %v49, 0.6931472
    %v51 = vrcp.pop 2.0794415
    %v52 = vmul.f32 %v50, %v51
    %v53 = vmul.f32 %v52, 16.0
    %v54 = vcvt.f32.s32.to.zero.pseudo %v53
    %v55 = vadd.s32 %v54, 16
    %vm56 = vcmp.lt.s32.totalorder %v55, 31
    %v57 = vsel %vm56, %v55, 31
    %v58 = vsel %vm44, %v43, %v57
    %v59 = vlaneseq
    %v60 = vshrl.u32 %v59, 7
    %v61 = vadd.s32 %v60, 8
    %v62 = vadd.s32 %v60, 16
    %v63 = vadd.s32 %v60, 24
    %v64 = vlaneseq
    %v65 = vshrl.u32 %v64, 7
    %v66 = vsub.s32 0, %v65
    %v67 = vrot.slane %v58, %v66
    %v68 = vlaneseq
    %v69 = vshrl.u32 %v68, 7
    %v70 = vsub.s32 1, %v69
    %v71 = vrot.slane %v58, %v70
    %vm72 = vcmp.eq.s32.totalorder %v67, %v60
    %vm73 = vcmp.eq.s32.totalorder %v71, %v60
    %vm74 = vcmp.eq.s32.totalorder %v67, %v61
    %vm75 = vcmp.eq.s32.totalorder %v71, %v61
    %vm76 = vcmp.eq.s32.totalorder %v67, %v62
    %vm77 = vcmp.eq.s32.totalorder %v71, %v62
    %vm78 = vcmp.eq.s32.totalorder %v67, %v63
    %vm79 = vcmp.eq.s32.totalorder %v71, %v63
    %v80 = vsel %vm72, 1, 0
    %v81 = vsel %vm73, 1, 0
    %v82 = vsel %vm74, 1, 0
    %v83 = vsel %vm75, 1, 0
    %v84 = vsel %vm76, 1, 0
    %v85 = vsel %vm77, 1, 0
    %v86 = vsel %vm78, 1, 0
    %v87 = vsel %vm79, 1, 0
    %v88 = vcvt.s32.f32 %v80
    %v89 = vcvt.s32.f32 %v81
    %v90 = vcvt.s32.f32 %v82
    %v91 = vcvt.s32.f32 %v83
    %v92 = vcvt.s32.f32 %v84
    %v93 = vcvt.s32.f32 %v85
    %v94 = vcvt.s32.f32 %v86
    %v95 = vcvt.s32.f32 %v87
    %v96 = vld [vmem:[#allocation5] sm:$0xff]
    %vm97 = vcmask 261120
    %v99 = vsel %vm97, %v96, 0
    %101 = vmatprep.subr.mxu0 %v89
    %102 = vmatpush1.msra.mxu0 %v88
    %103 = vmatprep.subr.mxu0 %v91
    %104 = vmatpush1.msra.mxu0 %v90
    %105 = vmatprep.subr.mxu0 %v93
    %106 = vmatpush1.msra.mxu0 %v92
    %107 = vmatprep.subr.mxu0 %v95
    %108 = vmatpush1.msra.mxu0 %v94
    %109 = vmatprep.subr.mxu0 0.0
    %110 = vmatpush1.msra.mxu0 0.0
    %111 = vmatprep.subr.mxu0 0.0
    %112 = vmatpush1.msra.mxu0 0.0
    %113 = vmatprep.subr.mxu0 0.0
    %114 = vmatpush1.msra.mxu0 0.0
    %115 = vmatprep.subr.mxu0 0.0
    %116 = vmatpush1.msra.mxu0 0.0
    %117 = vmatprep.subr.mxu0 0.0
    %118 = vmatpush1.msra.mxu0 0.0
    %119 = vmatprep.subr.mxu0 0.0
    %120 = vmatpush1.msra.mxu0 0.0
    %121 = vmatprep.subr.mxu0 0.0
    %122 = vmatpush1.msra.mxu0 0.0
    %123 = vmatprep.subr.mxu0 0.0
    %124 = vmatpush1.msra.mxu0 0.0
    %125 = vmatprep.subr.mxu0 0.0
    %126 = vmatpush1.msra.mxu0 0.0
    %127 = vmatprep.subr.mxu0 0.0
    %128 = vmatpush1.msra.mxu0 0.0
    %129 = vmatprep.subr.mxu0 0.0
    %130 = vmatpush1.msra.mxu0 0.0
    %131 = vmatprep.subr.mxu0 0.0
    %132 = vmatpush1.msra.mxu0 0.0
    %133 = vmatprep.subr.mxu0 0.0
    %134 = vmatpush1.msra.mxu0 0.0
    %135 = vmatprep.subr.mxu0 0.0
    %136 = vmatpush1.msra.mxu0 0.0
    %137 = vmatprep.subr.mxu0 0.0
    %138 = vmatpush1.msra.mxu0 0.0
    %139 = vmatprep.subr.mxu0 0.0
    %140 = vmatpush1.msra.mxu0 0.0
    %141 = vmatprep.subr.mxu0 0.0
    %142 = vmatpush1.msra.mxu0 0.0
    %143 = vmatprep.subr.mxu0 0.0
    %144 = vmatpush1.msra.mxu0 0.0
    %145 = vmatprep.subr.mxu0 0.0
    %146 = vmatpush1.msra.mxu0 0.0
    %147 = vmatprep.subr.mxu0 0.0
    %148 = vmatpush1.msra.mxu0 0.0
    %149 = vmatprep.subr.mxu0 0.0
    %150 = vmatpush1.msra.mxu0 0.0
    %151 = vmatprep.subr.mxu0 0.0
    %152 = vmatpush1.msra.mxu0 0.0
    %153 = vmatprep.subr.mxu0 0.0
    %154 = vmatpush1.msra.mxu0 0.0
    %155 = vmatprep.subr.mxu0 0.0
    %156 = vmatpush1.msra.mxu0 0.0
    %157 = vmatprep.subr.mxu0 0.0
    %158 = vmatpush1.msra.mxu0 0.0
    %159 = vmatprep.subr.mxu0 0.0
    %160 = vmatpush1.msra.mxu0 0.0
    %161 = vmatprep.subr.mxu0 0.0
    %162 = vmatpush1.msra.mxu0 0.0
    %163 = vmatprep.subr.mxu0 0.0
    %164 = vmatpush1.msra.mxu0 0.0
    %165 = vmatprep.mubr.f32.mxu0 0.0
    %166 = vmatmul.mubr.f32.gmra.mrb[0].mxu0 %v99
    %v167 = vpop.f32.mrb[0].mxu0
    %v168 = vadd.f32 0.0, %v167
    %v169 = vpop.f32.mrb[0].mxu0
    %v170 = vadd.f32 0.0, %v169
    %171 = vdwg.mxu0
    %172 = vst [vmem:[#allocation7] sm:$0xff] %v168
    %173 = vst [vmem:[#allocation7 + $0x8] sm:$0xff] %v170
    // Predicated region
    $region22: #{tpu_custom_call.1} parent=1 // pred_check
      _
    $region23: #{tpu_custom_call.1} parent=1 // pred_check_branch
      %175 = sbr.rel (0) target = $region25
    $region24: #{tpu_custom_call.1} parent=1 // pred_region
      %s177 = ssub.s32 256, 256
      %178 = vsyncadd [#allocation4], %s177
      %s180 = sshll.u32 [#allocation7], 4
      %s181 = int_to_ptr.vmem [resolvable:$true] %s180
      %183 = dma.vmem_to_hbm [thread:$0]  %s181, 256, %s3, [#allocation4]
    $region25: #{tpu_custom_call.1} parent=1 // pred_fallthru
      _
    // Predicated region
    $region26: #{tpu_custom_call.1} parent=1 // pred_check
      _
    $region27: #{tpu_custom_call.1} parent=1 // pred_check_branch
      %185 = sbr.rel (0) target = $region29
    $region28: #{tpu_custom_call.1} parent=1 // pred_region
      %186 = dma.done [#allocation4], 256
    $region29: #{tpu_custom_call.1} parent=1 // pred_fallthru
      _
    %187 = vsyncpa [#allocation3], 1
    %188 = vsyncpa [#allocation6], 1
    %189 = vsyncpa [#allocation4], 1

</llo_original>
